<compile_context>
chip_gen: v7x
topology: tpu7x:2x2x1
jax: 0.10.0
libtpu: 0.0.40
codegen_flags: <defaults>
</compile_context>

<pallas_src>
import jax
import jax.numpy as jnp
from jax.experimental import pallas as pl
from jax.experimental.pallas import tpu as pltpu


def idm_kernel(s_ref, ns_ref, w1_ref, w2_ref, w3_ref, b_ref, out_ref):
    H = w2_ref.shape[0]
    Apad = w3_ref.shape[1]
    cdt = w1_ref.dtype  # compute dtype (f32 or bf16)

    s = s_ref[...].astype(cdt)
    ns = ns_ref[...].astype(cdt)

    # Linear(2F -> H) as two lane-aligned matmuls (no lane-axis concat), + ReLU.
    h1 = jnp.dot(s, w1_ref[0], preferred_element_type=jnp.float32)
    h1 = h1 + jnp.dot(ns, w1_ref[1], preferred_element_type=jnp.float32)
    h1 = h1 + b_ref[0:1, :H]
    h1 = jnp.maximum(h1, 0.0).astype(cdt)

    # Linear(H -> H) + ReLU.
    h2 = jnp.dot(h1, w2_ref[...], preferred_element_type=jnp.float32)
    h2 = h2 + b_ref[1:2, :H]
    h2 = jnp.maximum(h2, 0.0).astype(cdt)

    # Linear(H -> A) (A padded to 128 lanes; wrapper slices).
    y = jnp.dot(h2, w3_ref[...], preferred_element_type=jnp.float32)
    y = y + b_ref[2:3, :Apad]
    out_ref[...] = y.astype(out_ref.dtype)


def prepare_params(params, compute_dtype=jnp.float32):
    """One-time packing of PyTorch-style params for the kernel.

    Split W1 into its state/next_state halves, pad W3/b3 to a lane-dense
    (multiple-of-128) output width, and collapse the three biases into one
    f32 slab. Weights are cast to `compute_dtype` here (not per call).
    """
    w1, b1, w2, b2, w3, b3 = params
    two_f, H = w1.shape
    F = two_f // 2
    A = w3.shape[1]
    assert H % 128 == 0, "hidden_size must be a multiple of 128 for this packing"
    Apad = ((A + 127) // 128) * 128
    L = max(H, Apad)

    w1_split = jnp.stack([w1[:F], w1[F:]], axis=0).astype(compute_dtype)   # (2, F, H)
    w2_c = w2.astype(compute_dtype)                                         # (H, H)
    w3_pad = jnp.zeros((H, Apad), compute_dtype).at[:, :A].set(
        w3.astype(compute_dtype))                                           # (H, Apad)

    bias = jnp.zeros((3, L), jnp.float32)
    bias = bias.at[0, :H].set(b1.reshape(-1))
    bias = bias.at[1, :H].set(b2.reshape(-1))
    bias = bias.at[2, :A].set(b3.reshape(-1))                               # (3, L)

    return (w1_split, w2_c, w3_pad, bias, A)


def inverse_transition_model(state, next_state, prepared):
    """Pallas forward of InverseTransitionModel.idm."""
    w1_split, w2, w3_pad, bias, A = prepared
    B, F = state.shape
    Apad = w3_pad.shape[1]

    # Tile rows only when there is enough work to fill the MXU; otherwise one step.
    block_m = 256 if (B >= 256 and B % 256 == 0) else B
    grid = (B // block_m,)

    row_map = lambda i: (i, 0)
    rep2 = lambda i: (0, 0)
    rep3 = lambda i: (0, 0, 0)

    out = pl.pallas_call(
        idm_kernel,
        out_shape=jax.ShapeDtypeStruct((B, Apad), jnp.float32),
        grid=grid,
        in_specs=[
            pl.BlockSpec((block_m, F), row_map),        # state
            pl.BlockSpec((block_m, F), row_map),        # next_state
            pl.BlockSpec(w1_split.shape, rep3),         # stacked W1 halves
            pl.BlockSpec(w2.shape, rep2),               # W2
            pl.BlockSpec(w3_pad.shape, rep2),           # W3 (lane-padded)
            pl.BlockSpec(bias.shape, rep2),             # packed biases
        ],
        out_specs=pl.BlockSpec((block_m, Apad), row_map),
        compiler_params=pltpu.CompilerParams(
            dimension_semantics=("parallel",)),
    )(state, next_state, w1_split, w2, w3_pad, bias)

    return out[:, :A]


def init_params(key, action_dim, encoder_feature_dim, hidden_size):
    """Deterministic parameter init (PyTorch-Linear-like uniform fan_in)."""
    def linear(k, fan_in, fan_out):
        kw, kb = jax.random.split(k)
        bound = 1.0 / (fan_in ** 0.5)
        w = jax.random.uniform(kw, (fan_in, fan_out), jnp.float32, -bound, bound)
        b = jax.random.uniform(kb, (1, fan_out), jnp.float32, -bound, bound)
        return w, b

    k1, k2, k3 = jax.random.split(key, 3)
    w1, b1 = linear(k1, encoder_feature_dim * 2, hidden_size)
    w2, b2 = linear(k2, hidden_size, hidden_size)
    w3, b3 = linear(k3, hidden_size, action_dim)
    return (w1, b1, w2, b2, w3, b3)


def reference(state, next_state, params):
    w1, b1, w2, b2, w3, b3 = params
    x = jnp.concatenate([state, next_state], axis=1)
    h1 = jnp.maximum(x @ w1 + b1, 0.0)
    h2 = jnp.maximum(h1 @ w2 + b2, 0.0)
    return h2 @ w3 + b3


if __name__ == "__main__":
    B = 8
    encoder_feature_dim = 50
    hidden_size = 128
    action_dim = 6

    key = jax.random.PRNGKey(0)
    kp, ks, kn = jax.random.split(key, 3)

    params = init_params(kp, action_dim, encoder_feature_dim, hidden_size)
    state = jax.random.normal(ks, (B, encoder_feature_dim), jnp.float32)
    next_state = jax.random.normal(kn, (B, encoder_feature_dim), jnp.float32)

    ref = reference(state, next_state, params)

    # f32 compute path (parity with the PyTorch module).
    prepared_f32 = prepare_params(params, jnp.float32)
    out_f32 = inverse_transition_model(state, next_state, prepared_f32)
    out_f32 = jax.block_until_ready(out_f32)
    assert out_f32.shape == (B, action_dim)
    assert jnp.allclose(out_f32, ref, atol=2e-4, rtol=2e-4)

    # bf16 compute path (perf variant for v6e/v7x): halves weight DMA / MXU passes.
    prepared_bf16 = prepare_params(params, jnp.bfloat16)
    out_bf16 = inverse_transition_model(state, next_state, prepared_bf16)
    out_bf16 = jax.block_until_ready(out_bf16)
    assert out_bf16.shape == (B, action_dim)
    assert bool(jnp.all(jnp.isfinite(out_bf16)))
    assert jnp.allclose(out_bf16, ref, atol=5e-2, rtol=5e-2)

    print("KERNEL_OK")
</pallas_src>

<mosaic_0001>
module attributes {stable_mosaic.version = 11 : i64} {
  func.func @idm_kernel(%arg0: i32, %arg1: memref<8x50xf32, #tpu.memory_space<vmem>>, %arg2: memref<8x50xf32, #tpu.memory_space<vmem>>, %arg3: memref<2x50x128xf32, #tpu.memory_space<vmem>>, %arg4: memref<128x128xf32, #tpu.memory_space<vmem>>, %arg5: memref<128x128xf32, #tpu.memory_space<vmem>>, %arg6: memref<3x128xf32, #tpu.memory_space<vmem>>, %arg7: memref<8x128xf32, #tpu.memory_space<vmem>>) attributes {dimension_semantics = [#tpu.dimension_semantics<parallel>], iteration_bounds = array<i64: 1>, scalar_prefetch = 0 : i64, scratch_operands = 0 : i64, tpu.core_type = #tpu.core_type<tc>, window_params = [{transform_indices = @transform_0, window_bounds = array<i64: 8, 50>}, {transform_indices = @transform_1, window_bounds = array<i64: 8, 50>}, {pipeline_mode = #tpu.pipeline_mode<synchronous>, transform_indices = @transform_2, window_bounds = array<i64: 2, 50, 128>}, {pipeline_mode = #tpu.pipeline_mode<synchronous>, transform_indices = @transform_3, window_bounds = array<i64: 128, 128>}, {pipeline_mode = #tpu.pipeline_mode<synchronous>, transform_indices = @transform_4, window_bounds = array<i64: 128, 128>}, {pipeline_mode = #tpu.pipeline_mode<synchronous>, transform_indices = @transform_5, window_bounds = array<i64: 3, 128>}, {transform_indices = @transform_6, window_bounds = array<i64: 8, 128>}]} {
    %c0 = arith.constant 0 : index
    %c0_0 = arith.constant 0 : index
    %0 = vector.load %arg1[%c0, %c0_0] : memref<8x50xf32, #tpu.memory_space<vmem>>, vector<8x50xf32>
    %c0_1 = arith.constant 0 : index
    %c0_2 = arith.constant 0 : index
    %1 = vector.load %arg2[%c0_1, %c0_2] : memref<8x50xf32, #tpu.memory_space<vmem>>, vector<8x50xf32>
    %c0_3 = arith.constant 0 : index
    %c0_4 = arith.constant 0 : index
    %c0_5 = arith.constant 0 : index
    %2 = vector.load %arg3[%c0_3, %c0_4, %c0_5] : memref<2x50x128xf32, #tpu.memory_space<vmem>>, vector<1x50x128xf32>
    %3 = vector.shape_cast %2 : vector<1x50x128xf32> to vector<50x128xf32>
    %cst = arith.constant dense<0.000000e+00> : vector<8x128xf32>
    %4 = tpu.matmul %0, %3, %cst {dimension_numbers = #tpu.dot_dimension_numbers<[1], [0], [0], [1], [0, 0, 1, 1], [], []>} : vector<8x50xf32>, vector<50x128xf32>, vector<8x128xf32> -> vector<8x128xf32>
    %c1 = arith.constant 1 : index
    %c0_6 = arith.constant 0 : index
    %c0_7 = arith.constant 0 : index
    %5 = vector.load %arg3[%c1, %c0_6, %c0_7] : memref<2x50x128xf32, #tpu.memory_space<vmem>>, vector<1x50x128xf32>
    %6 = vector.shape_cast %5 : vector<1x50x128xf32> to vector<50x128xf32>
    %cst_8 = arith.constant dense<0.000000e+00> : vector<8x128xf32>
    %7 = tpu.matmul %1, %6, %cst_8 {dimension_numbers = #tpu.dot_dimension_numbers<[1], [0], [0], [1], [0, 0, 1, 1], [], []>} : vector<8x50xf32>, vector<50x128xf32>, vector<8x128xf32> -> vector<8x128xf32>
    %8 = arith.addf %4, %7 : vector<8x128xf32>
    %c0_9 = arith.constant 0 : index
    %c0_10 = arith.constant 0 : index
    %9 = vector.load %arg6[%c0_9, %c0_10] : memref<3x128xf32, #tpu.memory_space<vmem>>, vector<1x128xf32>
    %10 = vector.broadcast %9 : vector<1x128xf32> to vector<8x128xf32>
    %11 = arith.addf %8, %10 : vector<8x128xf32>
    %cst_11 = arith.constant 0.000000e+00 : f32
    %12 = vector.broadcast %cst_11 : f32 to vector<8x128xf32>
    %13 = arith.maximumf %11, %12 : vector<8x128xf32>
    %c0_12 = arith.constant 0 : index
    %c0_13 = arith.constant 0 : index
    %14 = vector.load %arg4[%c0_12, %c0_13] : memref<128x128xf32, #tpu.memory_space<vmem>>, vector<128x128xf32>
    %cst_14 = arith.constant dense<0.000000e+00> : vector<8x128xf32>
    %15 = tpu.matmul %13, %14, %cst_14 {dimension_numbers = #tpu.dot_dimension_numbers<[1], [0], [0], [1], [0, 0, 1, 1], [], []>} : vector<8x128xf32>, vector<128x128xf32>, vector<8x128xf32> -> vector<8x128xf32>
    %c1_15 = arith.constant 1 : index
    %c0_16 = arith.constant 0 : index
    %16 = vector.load %arg6[%c1_15, %c0_16] : memref<3x128xf32, #tpu.memory_space<vmem>>, vector<1x128xf32>
    %17 = vector.broadcast %16 : vector<1x128xf32> to vector<8x128xf32>
    %18 = arith.addf %15, %17 : vector<8x128xf32>
    %cst_17 = arith.constant 0.000000e+00 : f32
    %19 = vector.broadcast %cst_17 : f32 to vector<8x128xf32>
    %20 = arith.maximumf %18, %19 : vector<8x128xf32>
    %c0_18 = arith.constant 0 : index
    %c0_19 = arith.constant 0 : index
    %21 = vector.load %arg5[%c0_18, %c0_19] : memref<128x128xf32, #tpu.memory_space<vmem>>, vector<128x128xf32>
    %cst_20 = arith.constant dense<0.000000e+00> : vector<8x128xf32>
    %22 = tpu.matmul %20, %21, %cst_20 {dimension_numbers = #tpu.dot_dimension_numbers<[1], [0], [0], [1], [0, 0, 1, 1], [], []>} : vector<8x128xf32>, vector<128x128xf32>, vector<8x128xf32> -> vector<8x128xf32>
    %c2 = arith.constant 2 : index
    %c0_21 = arith.constant 0 : index
    %23 = vector.load %arg6[%c2, %c0_21] : memref<3x128xf32, #tpu.memory_space<vmem>>, vector<1x128xf32>
    %24 = vector.broadcast %23 : vector<1x128xf32> to vector<8x128xf32>
    %25 = arith.addf %22, %24 : vector<8x128xf32>
    %c0_22 = arith.constant 0 : index
    %c0_23 = arith.constant 0 : index
    %26 = vector.load %arg7[%c0_22, %c0_23] : memref<8x128xf32, #tpu.memory_space<vmem>>, vector<8x128xf32>
    tpu.vector_store %arg7[%c0_22, %c0_23], %25 {strides = array<i32>} : memref<8x128xf32, #tpu.memory_space<vmem>>, vector<8x128xf32>,
    return
  }
  func.func @transform_0(%arg0: i32) -> (i32, i32) {
    %c0_i32 = arith.constant 0 : i32
    %c0_i32_0 = arith.constant 0 : i32
    return %arg0, %c0_i32 : i32, i32
  }
  func.func @transform_1(%arg0: i32) -> (i32, i32) {
    %c0_i32 = arith.constant 0 : i32
    %c0_i32_0 = arith.constant 0 : i32
    return %arg0, %c0_i32 : i32, i32
  }
  func.func @transform_2(%arg0: i32) -> (i32, i32, i32) {
    %c0_i32 = arith.constant 0 : i32
    %c0_i32_0 = arith.constant 0 : i32
    %c0_i32_1 = arith.constant 0 : i32
    %c0_i32_2 = arith.constant 0 : i32
    return %c0_i32, %c0_i32_0, %c0_i32_1 : i32, i32, i32
  }
  func.func @transform_3(%arg0: i32) -> (i32, i32) {
    %c0_i32 = arith.constant 0 : i32
    %c0_i32_0 = arith.constant 0 : i32
    %c0_i32_1 = arith.constant 0 : i32
    return %c0_i32, %c0_i32_0 : i32, i32
  }
  func.func @transform_4(%arg0: i32) -> (i32, i32) {
    %c0_i32 = arith.constant 0 : i32
    %c0_i32_0 = arith.constant 0 : i32
    %c0_i32_1 = arith.constant 0 : i32
    return %c0_i32, %c0_i32_0 : i32, i32
  }
  func.func @transform_5(%arg0: i32) -> (i32, i32) {
    %c0_i32 = arith.constant 0 : i32
    %c0_i32_0 = arith.constant 0 : i32
    %c0_i32_1 = arith.constant 0 : i32
    return %c0_i32, %c0_i32_0 : i32, i32
  }
  func.func @transform_6(%arg0: i32) -> (i32, i32) {
    %c0_i32 = arith.constant 0 : i32
    %c0_i32_0 = arith.constant 0 : i32
    return %arg0, %c0_i32 : i32, i32
  }
}

</mosaic_0001>

<llo_original>
// kernel: tpu_custom_call.1
$region0: #{tpu_custom_call.1}
  #allocation0 [shape = 'u32[]', space=smem, size = 0x4, offset = 0x4, fixed_abs, tag = 'smem constant byte address 0x4 - core index']
  #allocation1 [shape = 'u32[144,128]{1,0:T(1,128)}', space=vmem, size = 0x12000, scoped, tag = 'internal scratch']
  %s0 = inlined_call_operand.vmem [shape: f32[8,50], index: 0, kind: input, shape index: {}]
  %s1 = inlined_call_operand.vmem [shape: f32[8,50], index: 1, kind: input, shape index: {}]
  %s2 = inlined_call_operand.vmem [shape: f32[2,50,128], index: 2, kind: input, shape index: {}]
  %s3 = inlined_call_operand.vmem [shape: f32[128,128], index: 3, kind: input, shape index: {}]
  %s4 = inlined_call_operand.hbm [shape: f32[128,128], index: 4, kind: input, shape index: {}]
  %s5 = inlined_call_operand.vmem [shape: f32[3,128], index: 5, kind: input, shape index: {}]
  %s6 = inlined_call_operand.hbm [shape: f32[8,128], index: 6, kind: output, shape index: {}]
  %s7 = sld [smem:[#allocation0]]
  $region38: #{tpu_custom_call.1} parent=0
    _
  %s9 = ssub.s32 1, %s7
  %s10 = scalar_select 0, %s9, %s7
  $region1: #{tpu_custom_call.1} parent=0
    #allocation2 [shape = 'u8[65536]{0}', space=vmem, size = 0x10000, scoped, tag = 'input window, operand 4, single buffered']
    #allocation3 [shape = 's32[1]{0}', space=sflag, size = 0x4, scoped, tag = 'scoped memory for tpu_custom_call.1']
    #allocation4 [shape = 's32[1]{0}', space=sflag, size = 0x4, scoped, tag = 'scoped memory for tpu_custom_call.1']
    #allocation5 [shape = 'u8[4096]{0}', space=vmem, size = 0x1000, scoped, tag = 'output window, operand 0, single buffered']
    %11 = vsyncpa [#allocation3], 0
    %12 = vsyncpa [#allocation4], 0
    // Predicated region
    $region2: #{tpu_custom_call.1} parent=1 // pred_check
      _
    $region3: #{tpu_custom_call.1} parent=1 // pred_check_branch
      %14 = sbr.rel (0) target = $region5
    $region4: #{tpu_custom_call.1} parent=1 // pred_region
      _
    $region5: #{tpu_custom_call.1} parent=1 // pred_fallthru
      _
    // Predicated region
    $region6: #{tpu_custom_call.1} parent=1 // pred_check
      _
    $region7: #{tpu_custom_call.1} parent=1 // pred_check_branch
      %16 = sbr.rel (0) target = $region9
    $region8: #{tpu_custom_call.1} parent=1 // pred_region
      _
    $region9: #{tpu_custom_call.1} parent=1 // pred_fallthru
      _
    // Predicated region
    $region10: #{tpu_custom_call.1} parent=1 // pred_check
      _
    $region11: #{tpu_custom_call.1} parent=1 // pred_check_branch
      %18 = sbr.rel (0) target = $region13
    $region12: #{tpu_custom_call.1} parent=1 // pred_region
      _
    $region13: #{tpu_custom_call.1} parent=1 // pred_fallthru
      _
    // Predicated region
    $region14: #{tpu_custom_call.1} parent=1 // pred_check
      _
    $region15: #{tpu_custom_call.1} parent=1 // pred_check_branch
      %20 = sbr.rel (0) target = $region17
    $region16: #{tpu_custom_call.1} parent=1 // pred_region
      _
    $region17: #{tpu_custom_call.1} parent=1 // pred_fallthru
      _
    // Predicated region
    $region18: #{tpu_custom_call.1} parent=1 // pred_check
      _
    $region19: #{tpu_custom_call.1} parent=1 // pred_check_branch
      %22 = sbr.rel (0) target = $region21
    $region20: #{tpu_custom_call.1} parent=1 // pred_region
      %s24 = ssub.s32 2048, 2048
      %25 = vsyncadd [#allocation3], %s24
      %s26 = sshll.u32 [#allocation2], 4
      %s27 = int_to_ptr.vmem [resolvable:$true] %s26
      %32 = dma.hbm_to_vmem [thread:$0]  %s4, 2048, %s27, [#allocation3], 128, 128, 8
    $region21: #{tpu_custom_call.1} parent=1 // pred_fallthru
      _
    // Predicated region
    $region22: #{tpu_custom_call.1} parent=1 // pred_check
      _
    $region23: #{tpu_custom_call.1} parent=1 // pred_check_branch
      %34 = sbr.rel (0) target = $region25
    $region24: #{tpu_custom_call.1} parent=1 // pred_region
      _
    $region25: #{tpu_custom_call.1} parent=1 // pred_fallthru
      _
    // Predicated region
    $region26: #{tpu_custom_call.1} parent=1 // pred_check
      _
    $region27: #{tpu_custom_call.1} parent=1 // pred_check_branch
      %36 = sbr.rel (0) target = $region29
    $region28: #{tpu_custom_call.1} parent=1 // pred_region
      %37 = dma.done [#allocation3], 2048
    $region29: #{tpu_custom_call.1} parent=1 // pred_fallthru
      _
    %v38 = vld [vmem:[%s0] sm:$0xff]
    %v39 = vld [vmem:[%s1] sm:$0xff]
    %v40 = vld [vmem:[%s2] sm:$0xff]
    %v41 = vld [vmem:[%s2 + $0x8] sm:$0xff]
    %v42 = vld [vmem:[%s2 + $0x10] sm:$0xff]
    %v43 = vld [vmem:[%s2 + $0x18] sm:$0xff]
    %v44 = vld [vmem:[%s2 + $0x20] sm:$0xff]
    %v45 = vld [vmem:[%s2 + $0x28] sm:$0xff]
    %v46 = vld [vmem:[%s2 + $0x30] sm:$0x3]
    %s47 = scalar_lea.vmem %s2, 56
    %v48 = vld [vmem:[%s47] sm:$0xff]
    %v49 = vld [vmem:[%s47 + $0x8] sm:$0xff]
    %v50 = vld [vmem:[%s47 + $0x10] sm:$0xff]
    %v51 = vld [vmem:[%s47 + $0x18] sm:$0xff]
    %v52 = vld [vmem:[%s47 + $0x20] sm:$0xff]
    %v53 = vld [vmem:[%s47 + $0x28] sm:$0xff]
    %v54 = vld [vmem:[%s47 + $0x30] sm:$0x3]
    %vm55 = vcmask 408576
    %v57 = vsel %vm55, %v39, 0
    %vm59 = vcmask 1041408
    %v61 = vsel %vm59, %v54, 0
    %63 = vmatprep.subr.mxu0 0.0
    %64 = vmatpush1.msra.mxu0 %v48
    %65 = vmatprep.subr.mxu0 0.0
    %66 = vmatpush1.msra.mxu0 %v49
    %67 = vmatprep.subr.mxu0 0.0
    %68 = vmatpush1.msra.mxu0 %v50
    %69 = vmatprep.subr.mxu0 0.0
    %70 = vmatpush1.msra.mxu0 %v51
    %71 = vmatprep.subr.mxu0 0.0
    %72 = vmatpush1.msra.mxu0 %v52
    %73 = vmatprep.subr.mxu0 0.0
    %74 = vmatpush1.msra.mxu0 %v53
    %75 = vmatprep.subr.mxu0 0.0
    %76 = vmatpush1.msra.mxu0 %v61
    %77 = vmatprep.subr.mxu0 0.0
    %78 = vmatpush1.msra.mxu0 0.0
    %79 = vmatprep.subr.mxu0 0.0
    %80 = vmatpush1.msra.mxu0 0.0
    %81 = vmatprep.subr.mxu0 0.0
    %82 = vmatpush1.msra.mxu0 0.0
    %83 = vmatprep.subr.mxu0 0.0
    %84 = vmatpush1.msra.mxu0 0.0
    %85 = vmatprep.subr.mxu0 0.0
    %86 = vmatpush1.msra.mxu0 0.0
    %87 = vmatprep.subr.mxu0 0.0
    %88 = vmatpush1.msra.mxu0 0.0
    %89 = vmatprep.subr.mxu0 0.0
    %90 = vmatpush1.msra.mxu0 0.0
    %91 = vmatprep.subr.mxu0 0.0
    %92 = vmatpush1.msra.mxu0 0.0
    %93 = vmatprep.subr.mxu0 0.0
    %94 = vmatpush1.msra.mxu0 0.0
    %95 = vmatprep.subr.mxu0 0.0
    %96 = vmatpush1.msra.mxu0 0.0
    %97 = vmatprep.subr.mxu0 0.0
    %98 = vmatpush1.msra.mxu0 0.0
    %99 = vmatprep.subr.mxu0 0.0
    %100 = vmatpush1.msra.mxu0 0.0
    %101 = vmatprep.subr.mxu0 0.0
    %102 = vmatpush1.msra.mxu0 0.0
    %103 = vmatprep.subr.mxu0 0.0
    %104 = vmatpush1.msra.mxu0 0.0
    %105 = vmatprep.subr.mxu0 0.0
    %106 = vmatpush1.msra.mxu0 0.0
    %107 = vmatprep.subr.mxu0 0.0
    %108 = vmatpush1.msra.mxu0 0.0
    %109 = vmatprep.subr.mxu0 0.0
    %110 = vmatpush1.msra.mxu0 0.0
    %111 = vmatprep.subr.mxu0 0.0
    %112 = vmatpush1.msra.mxu0 0.0
    %113 = vmatprep.subr.mxu0 0.0
    %114 = vmatpush1.msra.mxu0 0.0
    %115 = vmatprep.subr.mxu0 0.0
    %116 = vmatpush1.msra.mxu0 0.0
    %117 = vmatprep.subr.mxu0 0.0
    %118 = vmatpush1.msra.mxu0 0.0
    %119 = vmatprep.subr.mxu0 0.0
    %120 = vmatpush1.msra.mxu0 0.0
    %121 = vmatprep.subr.mxu0 0.0
    %122 = vmatpush1.msra.mxu0 0.0
    %123 = vmatprep.subr.mxu0 0.0
    %124 = vmatpush1.msra.mxu0 0.0
    %125 = vmatprep.subr.mxu0 0.0
    %126 = vmatpush1.msra.mxu0 0.0
    %127 = vmatprep.mubr.f32.mxu0 0.0
    %128 = vmatmul.mubr.f32.gmra.mrb[0].mxu0 %v57
    %v129 = vpop.f32.mrb[0].mxu0
    %v130 = vadd.f32 0.0, %v129
    %v131 = vpop.f32.mrb[0].mxu0
    %132 = vdwg.mxu0
    %v134 = vsel %vm55, %v38, 0
    %v137 = vsel %vm59, %v46, 0
    %139 = vmatprep.subr.mxu0 0.0
    %140 = vmatpush1.msra.mxu0 %v40
    %141 = vmatprep.subr.mxu0 0.0
    %142 = vmatpush1.msra.mxu0 %v41
    %143 = vmatprep.subr.mxu0 0.0
    %144 = vmatpush1.msra.mxu0 %v42
    %145 = vmatprep.subr.mxu0 0.0
    %146 = vmatpush1.msra.mxu0 %v43
    %147 = vmatprep.subr.mxu0 0.0
    %148 = vmatpush1.msra.mxu0 %v44
    %149 = vmatprep.subr.mxu0 0.0
    %150 = vmatpush1.msra.mxu0 %v45
    %151 = vmatprep.subr.mxu0 0.0
    %152 = vmatpush1.msra.mxu0 %v137
    %153 = vmatprep.subr.mxu0 0.0
    %154 = vmatpush1.msra.mxu0 0.0
    %155 = vmatprep.subr.mxu0 0.0
    %156 = vmatpush1.msra.mxu0 0.0
    %157 = vmatprep.subr.mxu0 0.0
    %158 = vmatpush1.msra.mxu0 0.0
    %159 = vmatprep.subr.mxu0 0.0
    %160 = vmatpush1.msra.mxu0 0.0
    %161 = vmatprep.subr.mxu0 0.0
    %162 = vmatpush1.msra.mxu0 0.0
    %163 = vmatprep.subr.mxu0 0.0
    %164 = vmatpush1.msra.mxu0 0.0
    %165 = vmatprep.subr.mxu0 0.0
    %166 = vmatpush1.msra.mxu0 0.0
    %167 = vmatprep.subr.mxu0 0.0
    %168 = vmatpush1.msra.mxu0 0.0
    %169 = vmatprep.subr.mxu0 0.0
    %170 = vmatpush1.msra.mxu0 0.0
    %171 = vmatprep.subr.mxu0 0.0
    %172 = vmatpush1.msra.mxu0 0.0
    %173 = vmatprep.subr.mxu0 0.0
    %174 = vmatpush1.msra.mxu0 0.0
    %175 = vmatprep.subr.mxu0 0.0
    %176 = vmatpush1.msra.mxu0 0.0
    %177 = vmatprep.subr.mxu0 0.0
    %178 = vmatpush1.msra.mxu0 0.0
    %179 = vmatprep.subr.mxu0 0.0
    %180 = vmatpush1.msra.mxu0 0.0
    %181 = vmatprep.subr.mxu0 0.0
    %182 = vmatpush1.msra.mxu0 0.0
    %183 = vmatprep.subr.mxu0 0.0
    %184 = vmatpush1.msra.mxu0 0.0
    %185 = vmatprep.subr.mxu0 0.0
    %186 = vmatpush1.msra.mxu0 0.0
    %187 = vmatprep.subr.mxu0 0.0
    %188 = vmatpush1.msra.mxu0 0.0
    %189 = vmatprep.subr.mxu0 0.0
    %190 = vmatpush1.msra.mxu0 0.0
    %191 = vmatprep.subr.mxu0 0.0
    %192 = vmatpush1.msra.mxu0 0.0
    %193 = vmatprep.subr.mxu0 0.0
    %194 = vmatpush1.msra.mxu0 0.0
    %195 = vmatprep.subr.mxu0 0.0
    %196 = vmatpush1.msra.mxu0 0.0
    %197 = vmatprep.subr.mxu0 0.0
    %198 = vmatpush1.msra.mxu0 0.0
    %199 = vmatprep.subr.mxu0 0.0
    %200 = vmatpush1.msra.mxu0 0.0
    %201 = vmatprep.subr.mxu0 0.0
    %202 = vmatpush1.msra.mxu0 0.0
    %203 = vmatprep.mubr.f32.mxu0 0.0
    %204 = vmatmul.mubr.f32.gmra.mrb[0].mxu0 %v134
    %v205 = vpop.f32.mrb[0].mxu0
    %v206 = vadd.f32 %v130, %v205
    %v207 = vpop.f32.mrb[0].mxu0
    %208 = vdwg.mxu0
    %v209 = vld [vmem:[%s5] sm:$0x1]
    %v210 = vlaneseq
    %v211 = vshrl.u32 %v210, 7
    %v212 = vsub.s32 0, %v211
    %v213 = vrot.slane %v209, %v212
    %v214 = vadd.f32 %v206, %v213
    %v215 = vmax.f32 %v214, 0.0
    %v216 = vld [vmem:[%s3] sm:$0xff]
    %v217 = vld [vmem:[%s3 + $0x8] sm:$0xff]
    %v218 = vld [vmem:[%s3 + $0x10] sm:$0xff]
    %v219 = vld [vmem:[%s3 + $0x18] sm:$0xff]
    %v220 = vld [vmem:[%s3 + $0x20] sm:$0xff]
    %v221 = vld [vmem:[%s3 + $0x28] sm:$0xff]
    %v222 = vld [vmem:[%s3 + $0x30] sm:$0xff]
    %v223 = vld [vmem:[%s3 + $0x38] sm:$0xff]
    %v224 = vld [vmem:[%s3 + $0x40] sm:$0xff]
    %v225 = vld [vmem:[%s3 + $0x48] sm:$0xff]
    %v226 = vld [vmem:[%s3 + $0x50] sm:$0xff]
    %v227 = vld [vmem:[%s3 + $0x58] sm:$0xff]
    %v228 = vld [vmem:[%s3 + $0x60] sm:$0xff]
    %v229 = vld [vmem:[%s3 + $0x68] sm:$0xff]
    %v230 = vld [vmem:[%s3 + $0x70] sm:$0xff]
    %v231 = vld [vmem:[%s3 + $0x78] sm:$0xff]
    %v232 = vld [vmem:[%s5 + $0x1] sm:$0x1]
    %v233 = vlaneseq
    %v234 = vshrl.u32 %v233, 7
    %v235 = vsub.s32 0, %v234
    %v236 = vrot.slane %v232, %v235
    %237 = vmatprep.subr.mxu0 0.0
    %238 = vmatpush1.msra.mxu0 %v216
    %239 = vmatprep.subr.mxu0 0.0
    %240 = vmatpush1.msra.mxu0 %v217
    %241 = vmatprep.subr.mxu0 0.0
    %242 = vmatpush1.msra.mxu0 %v218
    %243 = vmatprep.subr.mxu0 0.0
    %244 = vmatpush1.msra.mxu0 %v219
    %245 = vmatprep.subr.mxu0 0.0
    %246 = vmatpush1.msra.mxu0 %v220
    %247 = vmatprep.subr.mxu0 0.0
    %248 = vmatpush1.msra.mxu0 %v221
    %249 = vmatprep.subr.mxu0 0.0
    %250 = vmatpush1.msra.mxu0 %v222
    %251 = vmatprep.subr.mxu0 0.0
    %252 = vmatpush1.msra.mxu0 %v223
    %253 = vmatprep.subr.mxu0 0.0
    %254 = vmatpush1.msra.mxu0 %v224
    %255 = vmatprep.subr.mxu0 0.0
    %256 = vmatpush1.msra.mxu0 %v225
    %257 = vmatprep.subr.mxu0 0.0
    %258 = vmatpush1.msra.mxu0 %v226
    %259 = vmatprep.subr.mxu0 0.0
    %260 = vmatpush1.msra.mxu0 %v227
    %261 = vmatprep.subr.mxu0 0.0
    %262 = vmatpush1.msra.mxu0 %v228
    %263 = vmatprep.subr.mxu0 0.0
    %264 = vmatpush1.msra.mxu0 %v229
    %265 = vmatprep.subr.mxu0 0.0
    %266 = vmatpush1.msra.mxu0 %v230
    %267 = vmatprep.subr.mxu0 0.0
    %268 = vmatpush1.msra.mxu0 %v231
    %269 = vmatprep.subr.mxu0 0.0
    %270 = vmatpush1.msra.mxu0 0.0
    %271 = vmatprep.subr.mxu0 0.0
    %272 = vmatpush1.msra.mxu0 0.0
    %273 = vmatprep.subr.mxu0 0.0
    %274 = vmatpush1.msra.mxu0 0.0
    %275 = vmatprep.subr.mxu0 0.0
    %276 = vmatpush1.msra.mxu0 0.0
    %277 = vmatprep.subr.mxu0 0.0
    %278 = vmatpush1.msra.mxu0 0.0
    %279 = vmatprep.subr.mxu0 0.0
    %280 = vmatpush1.msra.mxu0 0.0
    %281 = vmatprep.subr.mxu0 0.0
    %282 = vmatpush1.msra.mxu0 0.0
    %283 = vmatprep.subr.mxu0 0.0
    %284 = vmatpush1.msra.mxu0 0.0
    %285 = vmatprep.subr.mxu0 0.0
    %286 = vmatpush1.msra.mxu0 0.0
    %287 = vmatprep.subr.mxu0 0.0
    %288 = vmatpush1.msra.mxu0 0.0
    %289 = vmatprep.subr.mxu0 0.0
    %290 = vmatpush1.msra.mxu0 0.0
    %291 = vmatprep.subr.mxu0 0.0
    %292 = vmatpush1.msra.mxu0 0.0
    %293 = vmatprep.subr.mxu0 0.0
    %294 = vmatpush1.msra.mxu0 0.0
    %295 = vmatprep.subr.mxu0 0.0
    %296 = vmatpush1.msra.mxu0 0.0
    %297 = vmatprep.subr.mxu0 0.0
    %298 = vmatpush1.msra.mxu0 0.0
    %299 = vmatprep.subr.mxu0 0.0
    %300 = vmatpush1.msra.mxu0 0.0
    %301 = vmatprep.mubr.f32.mxu0 0.0
    %302 = vmatmul.mubr.f32.gmra.mrb[0].mxu0 %v215
    %v303 = vpop.f32.mrb[0].mxu0
    %v304 = vadd.f32 %v236, %v303
    %v305 = vpop.f32.mrb[0].mxu0
    %306 = vdwg.mxu0
    %v307 = vmax.f32 %v304, 0.0
    %v308 = vld [vmem:[#allocation2] sm:$0xff]
    %v309 = vld [vmem:[#allocation2 + $0x8] sm:$0xff]
    %v310 = vld [vmem:[#allocation2 + $0x10] sm:$0xff]
    %v311 = vld [vmem:[#allocation2 + $0x18] sm:$0xff]
    %v312 = vld [vmem:[#allocation2 + $0x20] sm:$0xff]
    %v313 = vld [vmem:[#allocation2 + $0x28] sm:$0xff]
    %v314 = vld [vmem:[#allocation2 + $0x30] sm:$0xff]
    %v315 = vld [vmem:[#allocation2 + $0x38] sm:$0xff]
    %v316 = vld [vmem:[#allocation2 + $0x40] sm:$0xff]
    %v317 = vld [vmem:[#allocation2 + $0x48] sm:$0xff]
    %v318 = vld [vmem:[#allocation2 + $0x50] sm:$0xff]
    %v319 = vld [vmem:[#allocation2 + $0x58] sm:$0xff]
    %v320 = vld [vmem:[#allocation2 + $0x60] sm:$0xff]
    %v321 = vld [vmem:[#allocation2 + $0x68] sm:$0xff]
    %v322 = vld [vmem:[#allocation2 + $0x70] sm:$0xff]
    %v323 = vld [vmem:[#allocation2 + $0x78] sm:$0xff]
    %v324 = vld [vmem:[%s5 + $0x2] sm:$0x1]
    %v325 = vlaneseq
    %v326 = vshrl.u32 %v325, 7
    %v327 = vsub.s32 0, %v326
    %v328 = vrot.slane %v324, %v327
    %329 = vmatprep.subr.mxu0 0.0
    %330 = vmatpush1.msra.mxu0 %v308
    %331 = vmatprep.subr.mxu0 0.0
    %332 = vmatpush1.msra.mxu0 %v309
    %333 = vmatprep.subr.mxu0 0.0
    %334 = vmatpush1.msra.mxu0 %v310
    %335 = vmatprep.subr.mxu0 0.0
    %336 = vmatpush1.msra.mxu0 %v311
    %337 = vmatprep.subr.mxu0 0.0
    %338 = vmatpush1.msra.mxu0 %v312
    %339 = vmatprep.subr.mxu0 0.0
    %340 = vmatpush1.msra.mxu0 %v313
    %341 = vmatprep.subr.mxu0 0.0
    %342 = vmatpush1.msra.mxu0 %v314
    %343 = vmatprep.subr.mxu0 0.0
    %344 = vmatpush1.msra.mxu0 %v315
    %345 = vmatprep.subr.mxu0 0.0
    %346 = vmatpush1.msra.mxu0 %v316
    %347 = vmatprep.subr.mxu0 0.0
    %348 = vmatpush1.msra.mxu0 %v317
    %349 = vmatprep.subr.mxu0 0.0
    %350 = vmatpush1.msra.mxu0 %v318
    %351 = vmatprep.subr.mxu0 0.0
    %352 = vmatpush1.msra.mxu0 %v319
    %353 = vmatprep.subr.mxu0 0.0
    %354 = vmatpush1.msra.mxu0 %v320
    %355 = vmatprep.subr.mxu0 0.0
    %356 = vmatpush1.msra.mxu0 %v321
    %357 = vmatprep.subr.mxu0 0.0
    %358 = vmatpush1.msra.mxu0 %v322
    %359 = vmatprep.subr.mxu0 0.0
    %360 = vmatpush1.msra.mxu0 %v323
    %361 = vmatprep.subr.mxu0 0.0
    %362 = vmatpush1.msra.mxu0 0.0
    %363 = vmatprep.subr.mxu0 0.0
    %364 = vmatpush1.msra.mxu0 0.0
    %365 = vmatprep.subr.mxu0 0.0
    %366 = vmatpush1.msra.mxu0 0.0
    %367 = vmatprep.subr.mxu0 0.0
    %368 = vmatpush1.msra.mxu0 0.0
    %369 = vmatprep.subr.mxu0 0.0
    %370 = vmatpush1.msra.mxu0 0.0
    %371 = vmatprep.subr.mxu0 0.0
    %372 = vmatpush1.msra.mxu0 0.0
    %373 = vmatprep.subr.mxu0 0.0
    %374 = vmatpush1.msra.mxu0 0.0
    %375 = vmatprep.subr.mxu0 0.0
    %376 = vmatpush1.msra.mxu0 0.0
    %377 = vmatprep.subr.mxu0 0.0
    %378 = vmatpush1.msra.mxu0 0.0
    %379 = vmatprep.subr.mxu0 0.0
    %380 = vmatpush1.msra.mxu0 0.0
    %381 = vmatprep.subr.mxu0 0.0
    %382 = vmatpush1.msra.mxu0 0.0
    %383 = vmatprep.subr.mxu0 0.0
    %384 = vmatpush1.msra.mxu0 0.0
    %385 = vmatprep.subr.mxu0 0.0
    %386 = vmatpush1.msra.mxu0 0.0
    %387 = vmatprep.subr.mxu0 0.0
    %388 = vmatpush1.msra.mxu0 0.0
    %389 = vmatprep.subr.mxu0 0.0
    %390 = vmatpush1.msra.mxu0 0.0
    %391 = vmatprep.subr.mxu0 0.0
    %392 = vmatpush1.msra.mxu0 0.0
    %393 = vmatprep.mubr.f32.mxu0 0.0
    %394 = vmatmul.mubr.f32.gmra.mrb[0].mxu0 %v307
    %v395 = vpop.f32.mrb[0].mxu0
    %v396 = vadd.f32 %v328, %v395
    %v397 = vpop.f32.mrb[0].mxu0
    %398 = vdwg.mxu0
    %399 = vst [vmem:[#allocation5] sm:$0xff] %v396
    // Predicated region
    $region30: #{tpu_custom_call.1} parent=1 // pred_check
      _
    $region31: #{tpu_custom_call.1} parent=1 // pred_check_branch
      %401 = sbr.rel (0) target = $region33
    $region32: #{tpu_custom_call.1} parent=1 // pred_region
      %s403 = ssub.s32 128, 128
      %404 = vsyncadd [#allocation4], %s403
      %s406 = sshll.u32 [#allocation5], 4
      %s407 = int_to_ptr.vmem [resolvable:$true] %s406
      %409 = dma.vmem_to_hbm [thread:$0]  %s407, 128, %s6, [#allocation4]
    $region33: #{tpu_custom_call.1} parent=1 // pred_fallthru
      _
    // Predicated region
    $region34: #{tpu_custom_call.1} parent=1 // pred_check
      _
    $region35: #{tpu_custom_call.1} parent=1 // pred_check_branch
      %411 = sbr.rel (0) target = $region37
    $region36: #{tpu_custom_call.1} parent=1 // pred_region
      %412 = dma.done [#allocation4], 128
    $region37: #{tpu_custom_call.1} parent=1 // pred_fallthru
      _
    %413 = vsyncpa [#allocation3], 1
    %414 = vsyncpa [#allocation4], 1

</llo_original>
